<compile_context>
chip_gen: v7x
topology: tpu7x:2x2x1
jax: 0.10.0
libtpu: 0.0.40
codegen_flags: <defaults>
</compile_context>

<pallas_src>
import jax
import jax.numpy as jnp
from jax.experimental import pallas as pl
from jax.experimental.pallas import tpu as pltpu

KH = 3
KW = 3
PAD = 1        # nn.Conv2d(in_ch, out_ch, kernel_size=3, stride=1, padding=1, bias=False)
EPS = 1e-3     # nn.BatchNorm2d(out_ch, eps=0.001)


def conv_bn_relu_kernel(x_ref, w_ref, bias_ref, o_ref):
    """Fused 3x3 conv + folded BN + ReLU, lane-packed (w, c) layout, Nb images per step.

    x_ref   : (Nb, H, W*Cin)          bf16, lane index = w*Cin + ci
    w_ref   : (KH*W*Cin, W*Cout)      bf16 banded weights (BN scale folded in,
                                      W-direction zero padding encoded as zero bands,
                                      K index = kh*W*Cin + iw*Cin + ci)
    bias_ref: (1, W*Cout)             f32 BN bias, tiled across W
    o_ref   : (Nb, H, W*Cout)         bf16, lane index = w*Cout + co
    """
    Nb, H, Kin = x_ref.shape
    Nout = o_ref.shape[-1]
    M = Nb * H

    x = x_ref[...].reshape(M, Kin)                                    # (M, W*Cin) bf16

    # Per-image row index: (row % H) masks so the row shifts never leak halo rows
    # across image boundaries when Nb > 1.
    row = jax.lax.broadcasted_iota(jnp.int32, (M, Kin), 0) % H
    zero = jnp.zeros_like(x)
    # kh = 0: output row h uses input row h-1 (row -1 is zero padding).
    x_up = jnp.where(row >= 1, jnp.roll(x, 1, axis=0), zero)
    # kh = 2: output row h uses input row h+1 (row H is zero padding).
    x_dn = jnp.where(row <= H - 2, jnp.roll(x, -1, axis=0), zero)

    # One MXU push/pop sequence: K = 3*W*Cin covers all kh (and, via the banded
    # weights, all kw) taps at once.  Accumulate in f32.
    x3 = jnp.concatenate([x_up, x, x_dn], axis=-1)                    # (M, 3*W*Cin) bf16
    acc = jnp.dot(x3, w_ref[...], preferred_element_type=jnp.float32)  # (M, W*Cout) f32

    y = jnp.maximum(acc + bias_ref[...], 0.0)                         # bias + ReLU
    o_ref[...] = y.astype(o_ref.dtype).reshape(Nb, H, Nout)


def prepare_basic_conv2d(conv_w_oihw, gamma, beta, running_mean, running_var, W):
    """One-time (per set of weights) prep: BN fold + banded bf16 weight + tiled bias.

    Hoisted out of the per-call path: the einsum below is O(KH*KW*W^2*Cin*Cout) XLA
    work and must not run on every forward call.
    """
    Cout, Cin, _, _ = conv_w_oihw.shape

    # --- BN fold (inference mode) ---------------------------------------------
    inv_std = jax.lax.rsqrt(running_var + EPS)
    scale = gamma * inv_std                                   # (Cout,)
    bias = beta - running_mean * scale                        # (Cout,)

    w_f = conv_w_oihw * scale[:, None, None, None]            # (Cout, Cin, KH, KW)
    w_t = jnp.transpose(w_f, (2, 3, 1, 0))                    # (KH, KW, Cin, Cout)

    # --- Banded weight matrix: (KH*W*Cin, W*Cout) ------------------------------
    # big_w[kh*W*Cin + iw*Cin + ci, ow*Cout + co] = w_t[kh, kw, ci, co]
    # where iw = ow + kw - PAD, zero when iw falls outside [0, W)  -> W padding free.
    iw_idx = jnp.arange(W)[None, :, None]
    ow_idx = jnp.arange(W)[None, None, :]
    kw_idx = jnp.arange(KW)[:, None, None]
    sel = (iw_idx == ow_idx + kw_idx - PAD).astype(w_t.dtype)          # (KW, W, W)
    big_w = jnp.einsum('kiw,hkcd->hicwd', sel, w_t)                    # (KH,W,Cin,W,Cout)
    big_w = big_w.reshape(KH * W * Cin, W * Cout).astype(jnp.bfloat16)

    bias_tiled = jnp.tile(bias, W).reshape(1, W * Cout).astype(jnp.float32)
    return big_w, bias_tiled, Cout


def _pick_batch_tile(N, H, max_rows=128, min_grid=2):
    """Largest per-step batch tile Nb such that Nb*H <= max_rows (keeps the f32
    accumulator + bf16 x3 comfortably under the 64-vreg cliff) while leaving at
    least `min_grid` grid steps when the batch allows it (v7x: 2 TensorCores; the
    parallel batch axis is the only thing sharding across them).
    On single-TC v5e/v6e, pass batch_tile=N to basic_conv2d_packed for grid=1."""
    best = 1
    for nb in range(1, N + 1):
        if N % nb != 0 or nb * H > max_rows:
            continue
        if N >= min_grid and N // nb < min_grid:
            continue
        best = nb
    return best


def basic_conv2d_packed(x_packed, big_w, bias_tiled, *, batch_tile=None):
    """x_packed: (N, H, W*Cin) bf16, lane index = w*Cin + ci.
    Returns (N, H, W*Cout) bf16, lane index = w*Cout + co."""
    N, H, Kin = x_packed.shape
    Kbig, Nout = big_w.shape

    Nb = batch_tile if batch_tile is not None else _pick_batch_tile(N, H)
    assert N % Nb == 0, (N, Nb)

    return pl.pallas_call(
        conv_bn_relu_kernel,
        out_shape=jax.ShapeDtypeStruct((N, H, Nout), jnp.bfloat16),
        grid_spec=pltpu.PrefetchScalarGridSpec(
            num_scalar_prefetch=0,
            grid=(N // Nb,),   # >= 2 parallel steps when possible (v7x megacore)
            in_specs=[
                pl.BlockSpec((Nb, H, Kin), lambda n: (n, 0, 0)),
                # Constant index_map: weights stay resident; footprint is ~2*48 KiB
                # double-buffered at this size (negligible on all generations).
                pl.BlockSpec((Kbig, Nout), lambda n: (0, 0)),
                pl.BlockSpec((1, Nout), lambda n: (0, 0)),
            ],
            out_specs=pl.BlockSpec((Nb, H, Nout), lambda n: (n, 0, 0)),
        ),
        compiler_params=pltpu.CompilerParams(
            dimension_semantics=("parallel",),
        ),
    )(x_packed, big_w, bias_tiled)


def basic_conv2d(x_nchw, params, *, batch_tile=None):
    """Convenience NCHW wrapper around the lane-packed kernel."""
    big_w, bias_tiled, Cout = params
    N, Cin, H, W = x_nchw.shape
    # TODO(synk): these layout transposes are extra HBM passes; keep the model in
    # lane-packed NHWC and call basic_conv2d_packed directly to avoid them.
    x_packed = (jnp.transpose(x_nchw, (0, 2, 3, 1))
                .reshape(N, H, W * Cin)
                .astype(jnp.bfloat16))
    out_packed = basic_conv2d_packed(x_packed, big_w, bias_tiled,
                                     batch_tile=batch_tile)
    out = out_packed.reshape(N, H, W, Cout)
    return jnp.transpose(out, (0, 3, 1, 2))                   # back to NCHW


def reference(x_nchw, conv_w_oihw, gamma, beta, running_mean, running_var):
    """Pure-JAX reference mirroring the kernel numerics (bf16 inputs, f32 accumulate)."""
    inv_std = 1.0 / jnp.sqrt(running_var + EPS)
    scale = gamma * inv_std
    bias = beta - running_mean * scale
    w_f = ((conv_w_oihw * scale[:, None, None, None])
           .astype(jnp.bfloat16).astype(jnp.float32))
    xb = x_nchw.astype(jnp.bfloat16).astype(jnp.float32)
    y = jax.lax.conv_general_dilated(
        xb, w_f, window_strides=(1, 1),
        padding=((PAD, PAD), (PAD, PAD)),
        dimension_numbers=("NCHW", "OIHW", "NCHW"),
        precision=jax.lax.Precision.HIGHEST)
    return jnp.maximum(y + bias.reshape(1, -1, 1, 1), 0.0)


if __name__ == "__main__":
    N, Cin, H, W = 2, 4, 16, 16
    Cout = 8

    key = jax.random.PRNGKey(0)
    kx, kw, kg, kb, km, kv = jax.random.split(key, 6)

    x = jax.random.normal(kx, (N, Cin, H, W), dtype=jnp.float32)
    conv_w = 0.1 * jax.random.normal(kw, (Cout, Cin, KH, KW), dtype=jnp.float32)
    gamma = 1.0 + 0.1 * jax.random.normal(kg, (Cout,), dtype=jnp.float32)
    beta = 0.1 * jax.random.normal(kb, (Cout,), dtype=jnp.float32)
    running_mean = 0.05 * jax.random.normal(km, (Cout,), dtype=jnp.float32)
    running_var = 0.5 + 0.5 * jnp.abs(jax.random.normal(kv, (Cout,), dtype=jnp.float32))

    # One-time weight prep (hoisted out of the per-call path).
    params = prepare_basic_conv2d(conv_w, gamma, beta, running_mean, running_var, W)
    params = jax.block_until_ready(params)

    out = basic_conv2d(x, params)
    out = jax.block_until_ready(out)

    ref = reference(x, conv_w, gamma, beta, running_mean, running_var)
    assert out.shape == (N, Cout, H, W)
    out_f32 = out.astype(jnp.float32)
    max_err = jnp.max(jnp.abs(out_f32 - ref))
    # bf16 output rounding -> ~0.4% relative error budget.
    assert jnp.allclose(out_f32, ref, atol=2e-2, rtol=2e-2), f"max abs err = {max_err}"

    print("KERNEL_OK")
</pallas_src>

<mosaic_0001>
module attributes {stable_mosaic.version = 11 : i64} {
  func.func @conv_bn_relu_kernel(%arg0: i32, %arg1: memref<1x16x64xbf16, #tpu.memory_space<vmem>>, %arg2: memref<192x128xbf16, #tpu.memory_space<vmem>>, %arg3: memref<1x128xf32, #tpu.memory_space<vmem>>, %arg4: memref<1x16x128xbf16, #tpu.memory_space<vmem>>) attributes {dimension_semantics = [#tpu.dimension_semantics<parallel>], iteration_bounds = array<i64: 2>, scalar_prefetch = 0 : i64, scratch_operands = 0 : i64, tpu.core_type = #tpu.core_type<tc>, window_params = [{transform_indices = @transform_0, window_bounds = array<i64: 1, 16, 64>}, {pipeline_mode = #tpu.pipeline_mode<synchronous>, transform_indices = @transform_1, window_bounds = array<i64: 192, 128>}, {pipeline_mode = #tpu.pipeline_mode<synchronous>, transform_indices = @transform_2, window_bounds = array<i64: 1, 128>}, {transform_indices = @transform_3, window_bounds = array<i64: 1, 16, 128>}]} {
    %c0 = arith.constant 0 : index
    %c0_0 = arith.constant 0 : index
    %c0_1 = arith.constant 0 : index
    %0 = vector.load %arg1[%c0, %c0_0, %c0_1] : memref<1x16x64xbf16, #tpu.memory_space<vmem>>, vector<1x16x64xbf16>
    %1 = vector.shape_cast %0 : vector<1x16x64xbf16> to vector<16x64xbf16>
    %2 = tpu.iota {dimensions = array<i32: 0>} : vector<16x64xi32>
    %c16_i32 = arith.constant 16 : i32
    %c0_i32 = arith.constant 0 : i32
    %3 = arith.cmpi eq, %c16_i32, %c0_i32 : i32
    %c1_i32 = arith.constant 1 : i32
    %4 = arith.select %3, %c1_i32, %c16_i32 : i32
    %5 = vector.broadcast %4 : i32 to vector<16x64xi32>
    %6 = arith.remsi %2, %5 : vector<16x64xi32>
    %c0_i32_2 = arith.constant 0 : i32
    %7 = vector.broadcast %c0_i32_2 : i32 to vector<16x64xi32>
    %8 = arith.cmpi ne, %6, %7 : vector<16x64xi32>
    %c0_i32_3 = arith.constant 0 : i32
    %9 = vector.broadcast %c0_i32_3 : i32 to vector<16x64xi32>
    %10 = arith.cmpi slt, %6, %9 : vector<16x64xi32>
    %c0_i32_4 = arith.constant 0 : i32
    %11 = arith.cmpi slt, %4, %c0_i32_4 : i32
    %12 = vector.broadcast %11 : i1 to vector<16x64xi1>
    %13 = vector.broadcast %12 : vector<16x64xi1> to vector<16x64xi1>
    %14 = arith.xori %10, %13 : vector<16x64xi1>
    %15 = arith.andi %14, %8 : vector<16x64xi1>
    %16 = vector.broadcast %4 : i32 to vector<16x64xi32>
    %17 = arith.addi %6, %16 : vector<16x64xi32>
    %18 = arith.select %15, %17, %6 : vector<16x64xi1>, vector<16x64xi32>
    %cst = arith.constant 0.000000e+00 : bf16
    %19 = vector.broadcast %cst : bf16 to vector<16x64xbf16>
    %c1_i32_5 = arith.constant 1 : i32
    %20 = vector.broadcast %c1_i32_5 : i32 to vector<16x64xi32>
    %21 = arith.cmpi sge, %18, %20 : vector<16x64xi32>
    %22 = vector.extract_strided_slice %1 {offsets = [15, 0], sizes = [1, 64], strides = [1, 1]} : vector<16x64xbf16> to vector<1x64xbf16>
    %23 = vector.extract_strided_slice %1 {offsets = [0, 0], sizes = [15, 64], strides = [1, 1]} : vector<16x64xbf16> to vector<15x64xbf16>
    %24 = tpu.concatenate %22, %23 in 0 : vector<1x64xbf16>, vector<15x64xbf16> -> vector<16x64xbf16>
    %25 = arith.select %21, %24, %19 : vector<16x64xi1>, vector<16x64xbf16>
    %c14_i32 = arith.constant 14 : i32
    %26 = vector.broadcast %c14_i32 : i32 to vector<16x64xi32>
    %27 = arith.cmpi sle, %18, %26 : vector<16x64xi32>
    %28 = vector.extract_strided_slice %1 {offsets = [1, 0], sizes = [15, 64], strides = [1, 1]} : vector<16x64xbf16> to vector<15x64xbf16>
    %29 = vector.extract_strided_slice %1 {offsets = [0, 0], sizes = [1, 64], strides = [1, 1]} : vector<16x64xbf16> to vector<1x64xbf16>
    %30 = tpu.concatenate %28, %29 in 0 : vector<15x64xbf16>, vector<1x64xbf16> -> vector<16x64xbf16>
    %31 = arith.select %27, %30, %19 : vector<16x64xi1>, vector<16x64xbf16>
    %32 = tpu.concatenate %25, %1, %31 in 1 : vector<16x64xbf16>, vector<16x64xbf16>, vector<16x64xbf16> -> vector<16x192xbf16>
    %c0_6 = arith.constant 0 : index
    %c0_7 = arith.constant 0 : index
    %33 = vector.load %arg2[%c0_6, %c0_7] : memref<192x128xbf16, #tpu.memory_space<vmem>>, vector<192x128xbf16>
    %cst_8 = arith.constant dense<0.000000e+00> : vector<16x128xf32>
    %34 = tpu.matmul %32, %33, %cst_8 {dimension_numbers = #tpu.dot_dimension_numbers<[1], [0], [0], [1], [0, 0, 1, 1], [], []>} : vector<16x192xbf16>, vector<192x128xbf16>, vector<16x128xf32> -> vector<16x128xf32>
    %c0_9 = arith.constant 0 : index
    %c0_10 = arith.constant 0 : index
    %35 = vector.load %arg3[%c0_9, %c0_10] : memref<1x128xf32, #tpu.memory_space<vmem>>, vector<1x128xf32>
    %36 = vector.broadcast %35 : vector<1x128xf32> to vector<16x128xf32>
    %37 = arith.addf %34, %36 : vector<16x128xf32>
    %cst_11 = arith.constant 0.000000e+00 : f32
    %38 = vector.broadcast %cst_11 : f32 to vector<16x128xf32>
    %39 = arith.maximumf %37, %38 : vector<16x128xf32>
    %40 = arith.truncf %39 : vector<16x128xf32> to vector<16x128xbf16>
    %41 = vector.shape_cast %40 : vector<16x128xbf16> to vector<1x16x128xbf16>
    %c0_12 = arith.constant 0 : index
    %c0_13 = arith.constant 0 : index
    %c0_14 = arith.constant 0 : index
    %42 = vector.load %arg4[%c0_12, %c0_13, %c0_14] : memref<1x16x128xbf16, #tpu.memory_space<vmem>>, vector<1x16x128xbf16>
    tpu.vector_store %arg4[%c0_12, %c0_13, %c0_14], %41 {strides = array<i32>} : memref<1x16x128xbf16, #tpu.memory_space<vmem>>, vector<1x16x128xbf16>,
    return
  }
  func.func @transform_0(%arg0: i32) -> (i32, i32, i32) {
    %c0_i32 = arith.constant 0 : i32
    %c0_i32_0 = arith.constant 0 : i32
    %c0_i32_1 = arith.constant 0 : i32
    return %arg0, %c0_i32, %c0_i32_0 : i32, i32, i32
  }
  func.func @transform_1(%arg0: i32) -> (i32, i32) {
    %c0_i32 = arith.constant 0 : i32
    %c0_i32_0 = arith.constant 0 : i32
    %c0_i32_1 = arith.constant 0 : i32
    return %c0_i32, %c0_i32_0 : i32, i32
  }
  func.func @transform_2(%arg0: i32) -> (i32, i32) {
    %c0_i32 = arith.constant 0 : i32
    %c0_i32_0 = arith.constant 0 : i32
    %c0_i32_1 = arith.constant 0 : i32
    return %c0_i32, %c0_i32_0 : i32, i32
  }
  func.func @transform_3(%arg0: i32) -> (i32, i32, i32) {
    %c0_i32 = arith.constant 0 : i32
    %c0_i32_0 = arith.constant 0 : i32
    %c0_i32_1 = arith.constant 0 : i32
    return %arg0, %c0_i32, %c0_i32_0 : i32, i32, i32
  }
}

</mosaic_0001>

<llo_original>
// kernel: tpu_custom_call.1
$region0: #{tpu_custom_call.1}
  #allocation0 [shape = 'u32[]', space=smem, size = 0x4, offset = 0x4, fixed_abs, tag = 'smem constant byte address 0x4 - core index']
  #allocation1 [shape = 'u32[144,128]{1,0:T(1,128)}', space=vmem, size = 0x12000, scoped, tag = 'internal scratch']
  %s0 = inlined_call_operand.hbm [shape: bf16[2,16,64], index: 0, kind: input, shape index: {}]
  %s1 = inlined_call_operand.hbm [shape: bf16[192,128], index: 1, kind: input, shape index: {}]
  %s2 = inlined_call_operand.vmem [shape: f32[1,128], index: 2, kind: input, shape index: {}]
  %s3 = inlined_call_operand.hbm [shape: bf16[2,16,128], index: 3, kind: output, shape index: {}]
  %s4 = sld [smem:[#allocation0]]
  $region53: #{tpu_custom_call.1} parent=0
    _
  %s6 = ssub.s32 1, %s4
  %s7 = scalar_select 0, %s6, %s4
  $region1: #{tpu_custom_call.1} parent=0
    #allocation2 [shape = 'u8[8192]{0}', space=vmem, size = 0x2000, scoped, tag = 'input window, operand 0']
    #allocation3 [shape = 's32[2]{0}', space=sflag, size = 0x8, scoped, tag = 'scoped memory for tpu_custom_call.1']
    #allocation4 [shape = 's32[2]{0}', space=sflag, size = 0x8, scoped, tag = 'scoped memory for tpu_custom_call.1']
    #allocation5 [shape = 'u8[49152]{0}', space=vmem, size = 0xc000, scoped, tag = 'input window, operand 1, single buffered']
    #allocation6 [shape = 's32[1]{0}', space=sflag, size = 0x4, scoped, tag = 'scoped memory for tpu_custom_call.1']
    #allocation7 [shape = 'u8[8192]{0}', space=vmem, size = 0x2000, scoped, tag = 'output window, operand 0']
    %8 = vsyncpa [#allocation3], 0
    %s9 = scalar_lea.sflag [#allocation3], 1
    %10 = vsyncpa %s9, 0
    %11 = vsyncpa [#allocation6], 0
    %12 = vsyncpa [#allocation4], 0
    %s13 = scalar_lea.sflag [#allocation4], 1
    %14 = vsyncpa %s13, 0
    loop: start=0, step=1, limit=4
    $region2: #{tpu_custom_call.1} parent=1 // loop_pre_header
      _
    $region3: #{tpu_custom_call.1} parent=1 // loop_header
      %s16 = sphi 0, %s20
      %p17 = scmp.ge.s32.totalorder %s16, 4
      %s26 = sphi 0, %s28
      %s29 = sphi 0, %s26
      %s30 = sphi 0, %s29
      %s46 = sphi 0, %s30
      %s50 = sphi 0, %s50
      %s52 = sphi 0, %s50
      %s53 = sphi 0, %s52
      %s67 = sphi 0, %s53
      %s71 = sphi 0, %s71
      %s73 = sphi 0, %s71
      %s74 = sphi 0, %s73
      %s88 = sphi 0, %s74
      %s94 = sphi 0, %s96
      %s97 = sphi 0, %s94
      %s98 = sphi 0, %s97
      %s114 = sphi 0, %s98
    $region4: #{tpu_custom_call.1} parent=1 // loop_header_branch
      %19 = sbr.rel (%p17) target = $region8
    $region5: #{tpu_custom_call.1} parent=1 // loop_body
      %s21 = ssub.s32 %s16, 1
      %s22 = ssub.s32 %s16, 2
      %s23 = sadd.s32 %s16, 1
      %s24 = ssub.s32 %s16, %s23
      %p25 = scmp.eq.s32.totalorder %s24, 0
      %s27 = sadd.s32 %s26, 1
      %s28 = scalar_select %p25, %s26, %s27
      %p31 = pneg %p25
      %p32 = scmp.eq.s32.totalorder %s16, 1
      %p33 = por %p31, %p32
      %p34 = scmp.ne.s32.totalorder %s26, %s29
      %p35 = scmp.eq.s32.totalorder %s16, 0
      %p36 = por %p34, %p35
      %p37 = scmp.ne.s32.totalorder %s26, %s29
      %p38 = scmp.eq.s32.totalorder %s21, 1
      %p39 = por %p37, %p38
      %p40 = scmp.ne.s32.totalorder %s29, %s30
      %p41 = scmp.eq.s32.totalorder %s21, 0
      %p42 = por %p40, %p41
      %p43 = scmp.ne.s32.totalorder %s29, %s30
      %p44 = scmp.eq.s32.totalorder %s22, 1
      %p45 = por %p43, %p44
      %p47 = scmp.ne.s32.totalorder %s30, %s46
      %p48 = scmp.eq.s32.totalorder %s22, 0
      %p49 = por %p47, %p48
      %s51 = sadd.s32 %s50, 1
      %p54 = scmp.eq.s32.totalorder %s16, 1
      %p55 = scmp.ne.s32.totalorder %s50, %s52
      %p56 = scmp.eq.s32.totalorder %s16, 0
      %p57 = por %p55, %p56
      %p58 = scmp.ne.s32.totalorder %s50, %s52
      %p59 = scmp.eq.s32.totalorder %s21, 1
      %p60 = por %p58, %p59
      %p61 = scmp.ne.s32.totalorder %s52, %s53
      %p62 = scmp.eq.s32.totalorder %s21, 0
      %p63 = por %p61, %p62
      %p64 = scmp.ne.s32.totalorder %s52, %s53
      %p65 = scmp.eq.s32.totalorder %s22, 1
      %p66 = por %p64, %p65
      %p68 = scmp.ne.s32.totalorder %s53, %s67
      %p69 = scmp.eq.s32.totalorder %s22, 0
      %p70 = por %p68, %p69
      %s72 = sadd.s32 %s71, 1
      %p75 = scmp.eq.s32.totalorder %s16, 1
      %p76 = scmp.ne.s32.totalorder %s71, %s73
      %p77 = scmp.eq.s32.totalorder %s16, 0
      %p78 = por %p76, %p77
      %p79 = scmp.ne.s32.totalorder %s71, %s73
      %p80 = scmp.eq.s32.totalorder %s21, 1
      %p81 = por %p79, %p80
      %p82 = scmp.ne.s32.totalorder %s73, %s74
      %p83 = scmp.eq.s32.totalorder %s21, 0
      %p84 = por %p82, %p83
      %p85 = scmp.ne.s32.totalorder %s73, %s74
      %p86 = scmp.eq.s32.totalorder %s22, 1
      %p87 = por %p85, %p86
      %p89 = scmp.ne.s32.totalorder %s74, %s88
      %p90 = scmp.eq.s32.totalorder %s22, 0
      %p91 = por %p89, %p90
      %s92 = ssub.s32 %s16, %s23
      %p93 = scmp.eq.s32.totalorder %s92, 0
      %s95 = sadd.s32 %s94, 1
      %s96 = scalar_select %p93, %s94, %s95
      %p99 = pneg %p93
      %p100 = scmp.eq.s32.totalorder %s16, 1
      %p101 = por %p99, %p100
      %p102 = scmp.ne.s32.totalorder %s94, %s97
      %p103 = scmp.eq.s32.totalorder %s16, 0
      %p104 = por %p102, %p103
      %p105 = scmp.ne.s32.totalorder %s94, %s97
      %p106 = scmp.eq.s32.totalorder %s21, 1
      %p107 = por %p105, %p106
      %p108 = scmp.ne.s32.totalorder %s97, %s98
      %p109 = scmp.eq.s32.totalorder %s21, 0
      %p110 = por %p108, %p109
      %p111 = scmp.ne.s32.totalorder %s97, %s98
      %p112 = scmp.eq.s32.totalorder %s22, 1
      %p113 = por %p111, %p112
      %p115 = scmp.ne.s32.totalorder %s98, %s114
      %p116 = scmp.eq.s32.totalorder %s22, 0
      %p117 = por %p115, %p116
      %p118 = scmp.le.s32.totalorder 1, %s16
      %p119 = scmp.lt.s32.totalorder %s16, 3
      %p120 = pnand %p118, %p119
      %p121 = pneg %p120
      // Predicated region
      $region9: #{tpu_custom_call.1} parent=5 // pred_check
        _
      $region10: #{tpu_custom_call.1} parent=5 // pred_check_branch
        %123 = sbr.rel (%p120) target = $region12
      $region11: #{tpu_custom_call.1} parent=5 // pred_region
        %s124 = ssub.s32 %s16, 1
        // Predicated region
        $region13: #{tpu_custom_call.1} parent=11 // pred_check
          %p125 = pneg %p63
        $region14: #{tpu_custom_call.1} parent=11 // pred_check_branch
          %127 = sbr.rel (%p125) target = $region16
        $region15: #{tpu_custom_call.1} parent=11 // pred_region
          %s129 = ssub.s32 1536, 1536
          %130 = vsyncadd [#allocation6], %s129
          %s131 = sshll.u32 [#allocation5], 4
          %s132 = int_to_ptr.vmem [resolvable:$true] %s131
          %137 = dma.hbm_to_vmem [thread:$0]  %s1, 1536, %s132, [#allocation6], 64, 64, 4
        $region16: #{tpu_custom_call.1} parent=11 // pred_fallthru
          _
        // Predicated region
        $region17: #{tpu_custom_call.1} parent=11 // pred_check
          %p138 = pneg %p84
        $region18: #{tpu_custom_call.1} parent=11 // pred_check_branch
          %140 = sbr.rel (%p138) target = $region20
        $region19: #{tpu_custom_call.1} parent=11 // pred_region
          _
        $region20: #{tpu_custom_call.1} parent=11 // pred_fallthru
          _
      $region12: #{tpu_custom_call.1} parent=5 // pred_fallthru
        _
      %p141 = scmp.lt.s32.totalorder %s16, 2
      // Predicated region
      $region21: #{tpu_custom_call.1} parent=5 // pred_check
        %p142 = pneg %p141
      $region22: #{tpu_custom_call.1} parent=5 // pred_check_branch
        %144 = sbr.rel (%p142) target = $region24
      $region23: #{tpu_custom_call.1} parent=5 // pred_region
        // Predicated region
        $region25: #{tpu_custom_call.1} parent=23 // pred_check
          %p145 = pneg %p36
        $region26: #{tpu_custom_call.1} parent=23 // pred_check_branch
          %147 = sbr.rel (%p145) target = $region28
        $region27: #{tpu_custom_call.1} parent=23 // pred_region
          %s148 = sand.u32 %s26, 1
          %s149 = scalar_lea.sflag [#allocation3], %s148
          %s150 = sand.u32 %s26, 1
          %s151 = smul.addr %s150, 8
          %s152 = scalar_lea.vmem [#allocation2], %s151
          %s154 = ssub.s32 128, 128
          %155 = vsyncadd %s149, %s154
          %s156 = smul.addr %s16, 2
          %s157 = smul.addr %s156, 64
          %s158 = scalar_lea.hbm %s0, %s157
          %s159 = sshll.u32 %s152, 4
          %s160 = int_to_ptr.vmem [resolvable:$true] %s159
          %165 = dma.hbm_to_vmem [thread:$0]  %s158, 128, %s160, %s149, 64, 64, 4
        $region28: #{tpu_custom_call.1} parent=23 // pred_fallthru
          _
      $region24: #{tpu_custom_call.1} parent=5 // pred_fallthru
        _
      %p166 = scmp.le.s32.totalorder 1, %s16
      %p167 = scmp.lt.s32.totalorder %s16, 3
      %p168 = pnand %p166, %p167
      %p169 = pneg %p168
      // Predicated region
      $region29: #{tpu_custom_call.1} parent=5 // pred_check
        _
      $region30: #{tpu_custom_call.1} parent=5 // pred_check_branch
        %171 = sbr.rel (%p168) target = $region32
      $region31: #{tpu_custom_call.1} parent=5 // pred_region
        %s172 = ssub.s32 %s16, 1
        %s173 = sand.u32 %s29, 1
        %s174 = scalar_lea.sflag [#allocation3], %s173
        %s175 = sand.u32 %s29, 1
        %s176 = smul.addr %s175, 8
        %s177 = scalar_lea.vmem [#allocation2], %s176
        // Predicated region
        $region33: #{tpu_custom_call.1} parent=31 // pred_check
          %p178 = pneg %p42
        $region34: #{tpu_custom_call.1} parent=31 // pred_check_branch
          %180 = sbr.rel (%p178) target = $region36
        $region35: #{tpu_custom_call.1} parent=31 // pred_region
          %181 = dma.done %s174, 128
        $region36: #{tpu_custom_call.1} parent=31 // pred_fallthru
          _
        // Predicated region
        $region37: #{tpu_custom_call.1} parent=31 // pred_check
          %p182 = pneg %p63
        $region38: #{tpu_custom_call.1} parent=31 // pred_check_branch
          %184 = sbr.rel (%p182) target = $region40
        $region39: #{tpu_custom_call.1} parent=31 // pred_region
          %185 = dma.done [#allocation6], 1536
        $region40: #{tpu_custom_call.1} parent=31 // pred_fallthru
          _
        %s186 = sand.u32 %s29, 1
        %s187 = scalar_lea.sflag [#allocation3], %s186
        %s188 = sand.u32 %s29, 1
        %s189 = smul.addr %s188, 8
        %s190 = scalar_lea.vmem [#allocation2], %s189
        %p191 = pneg %p42
        %p192 = pneg %p39
        %p193 = pneg %p63
        %p194 = pneg %p60
        %p195 = pneg %p84
        %p196 = pneg %p81
        %p197 = pneg %p110
        %p198 = pneg %p107
        %s199 = sand.u32 %s97, 1
        %s200 = scalar_lea.sflag [#allocation4], %s199
        %s201 = sand.u32 %s97, 1
        %s202 = smul.addr %s201, 8
        %s203 = scalar_lea.vmem [#allocation7], %s202
        %v207 = vld [vmem:[%s177] sm:$0xf]
        %v208 = vld [vmem:[%s177 + $0x4] sm:$0xf]
        %v209 = vlaneseq
        %v210 = vshrl.u32 %v209, 7
        %v211 = vadd.s32 %v210, 8
        %vm212 = vcmp.lt.s32.totalorder %v210, 0
        %v213 = vsub.s32 0, %v210
        %v214 = vsel %vm212, %v213, %v210
        %v215 = vshrl.u32 %v214, 4
        %v216 = vand.u32 %v214, 15
        %v217 = vsub.s32 0, %v216
        %v218 = vsel %vm212, %v217, %v216
        %vm219 = vcmp.lt.s32.totalorder %v211, 0
        %v220 = vsub.s32 0, %v211
        %v221 = vsel %vm219, %v220, %v211
        %v222 = vshrl.u32 %v221, 4
        %v223 = vand.u32 %v221, 15
        %v224 = vsub.s32 0, %v223
        %v225 = vsel %vm219, %v224, %v223
        %vm226 = vcmp.ne.s32.totalorder %v218, 0
        %vm227 = vcmp.ne.s32.totalorder %v225, 0
        %vm228 = vcmp.lt.s32.totalorder %v218, 0
        %vm229 = vcmp.lt.s32.totalorder %v225, 0
        %vm230 = vmand %vm228, %vm226
        %vm231 = vmand %vm229, %vm227
        %v232 = vadd.s32 %v218, 16
        %v233 = vadd.s32 %v225, 16
        %v234 = vsel %vm230, %v232, %v218
        %v235 = vsel %vm231, %v233, %v225
        %vm236 = vcmp.ge.s32.totalorder %v234, 1
        %vm237 = vcmp.ge.s32.totalorder %v235, 1
        %v239 = vunpack.c.l.b16 %v208
        %v240 = vpack.c.b16 %v239, %v239
        %v242 = vshrl.u32 %v240, 16
        %v244 = vrot.slane %v242, 3
        %v247 = vunpack.c.l.b16 %v207
        %v248 = vpack.c.b16 %v239, %v247
        %v250 = vshrl.u32 %v248, 16
        %v252 = vrot.slane %v250, 7
        %v253 = vshll.u32 %v248, 16
        %v255 = vor.u32 %v252, %v253
        %vm257 = vcmask 1040384
        %vm258 = vsmask.f32 256
        %vm259 = vmand %vm257, %vm258
        %v260 = vsel %vm259, %v244, %v255
        %vm261 = vmpackc.low %vm236, %vm236
        %vm262 = vmpackc.low %vm237, %vm237
        %v263 = vsel %vm261, 65537, 0
        %v264 = vsel %vm262, 65537, 0
        %v265 = vunpack.c.l.b16 %v263
        %v266 = vunpack.c.l.b16 %v264
        %v267 = vpack.c.b16 %v266, %v265
        %vm268 = vcmp.ne.s16.totalorder %v267, 0
        %v269 = vsel %vm268, %v260, 0
        %vm270 = vcmp.le.s32.totalorder %v234, 14
        %vm271 = vcmp.le.s32.totalorder %v235, 14
        %v272 = vrot.slane %v253, 1
        %v273 = vor.u32 %v250, %v272
        %v275 = vpack.c.b16 %v247, %v247
        %v277 = vshll.u32 %v275, 16
        %v279 = vrot.slane %v277, 1
        %vm281 = vcmask 1047552
        %vm282 = vsmask.f32 7424
        %vm283 = vmand %vm281, %vm282
        %v284 = vsel %vm283, %v273, %v279
        %vm285 = vmpackc.low %vm270, %vm270
        %vm286 = vmpackc.low %vm271, %vm271
        %v287 = vsel %vm285, 65537, 0
        %v288 = vsel %vm286, 65537, 0
        %v289 = vunpack.c.l.b16 %v287
        %v290 = vunpack.c.l.b16 %v288
        %v291 = vpack.c.b16 %v290, %v289
        %vm292 = vcmp.ne.s16.totalorder %v291, 0
        %v293 = vsel %vm292, %v284, 0
        %294 = vrot.lane.b32.xlu0 %v248, 64
        %v295 = vpop.permute.xlu0 %294
        %vm296 = vcmask 523264
        %v299 = vsel %vm296, %v269, %v295
        %v301 = vld [vmem:[#allocation5] sm:$0xf]
        %v302 = vld [vmem:[#allocation5 + $0x4] sm:$0xf]
        %v303 = vld [vmem:[#allocation5 + $0x8] sm:$0xf]
        %v304 = vld [vmem:[#allocation5 + $0xc] sm:$0xf]
        %v305 = vld [vmem:[#allocation5 + $0x10] sm:$0xf]
        %v306 = vld [vmem:[#allocation5 + $0x14] sm:$0xf]
        %v307 = vld [vmem:[#allocation5 + $0x18] sm:$0xf]
        %v308 = vld [vmem:[#allocation5 + $0x1c] sm:$0xf]
        %v309 = vld [vmem:[#allocation5 + $0x20] sm:$0xf]
        %v310 = vld [vmem:[#allocation5 + $0x24] sm:$0xf]
        %v311 = vld [vmem:[#allocation5 + $0x28] sm:$0xf]
        %v312 = vld [vmem:[#allocation5 + $0x2c] sm:$0xf]
        %v313 = vld [vmem:[#allocation5 + $0x30] sm:$0xf]
        %v314 = vld [vmem:[#allocation5 + $0x34] sm:$0xf]
        %v315 = vld [vmem:[#allocation5 + $0x38] sm:$0xf]
        %v316 = vld [vmem:[#allocation5 + $0x3c] sm:$0xf]
        %v317 = vld [vmem:[#allocation5 + $0x40] sm:$0xf]
        %v318 = vld [vmem:[#allocation5 + $0x44] sm:$0xf]
        %v319 = vld [vmem:[#allocation5 + $0x48] sm:$0xf]
        %v320 = vld [vmem:[#allocation5 + $0x4c] sm:$0xf]
        %v321 = vld [vmem:[#allocation5 + $0x50] sm:$0xf]
        %v322 = vld [vmem:[#allocation5 + $0x54] sm:$0xf]
        %v323 = vld [vmem:[#allocation5 + $0x58] sm:$0xf]
        %v324 = vld [vmem:[#allocation5 + $0x5c] sm:$0xf]
        %v325 = vld [vmem:[%s2] sm:$0x1]
        %v327 = vlaneseq
        %v328 = vshrl.u32 %v327, 7
        %v329 = vsub.s32 0, %v328
        %v330 = vrot.slane %v325, %v329
        %v356 = vunpack.c.l.b16 %v301
        %v357 = vunpack.c.l.b16 %v302
        %v358 = vunpack.c.l.b16 %v303
        %v359 = vunpack.c.l.b16 %v304
        %v360 = vunpack.c.l.b16 %v305
        %v361 = vunpack.c.l.b16 %v306
        %v362 = vunpack.c.l.b16 %v307
        %v363 = vunpack.c.l.b16 %v308
        %v364 = vunpack.c.l.b16 %v309
        %v365 = vunpack.c.l.b16 %v310
        %v366 = vunpack.c.l.b16 %v311
        %v367 = vunpack.c.l.b16 %v312
        %v368 = vunpack.c.l.b16 %v313
        %v369 = vunpack.c.l.b16 %v314
        %v370 = vunpack.c.l.b16 %v315
        %v371 = vunpack.c.l.b16 %v316
        %v372 = vunpack.c.l.b16 %v317
        %v373 = vunpack.c.l.b16 %v318
        %v374 = vunpack.c.l.b16 %v319
        %v375 = vunpack.c.l.b16 %v320
        %v376 = vunpack.c.l.b16 %v321
        %v377 = vunpack.c.l.b16 %v322
        %v378 = vunpack.c.l.b16 %v323
        %v379 = vunpack.c.l.b16 %v324
        %v380 = vpack.c.b16 %v357, %v356
        %v381 = vpack.c.b16 %v359, %v358
        %v382 = vpack.c.b16 %v361, %v360
        %v383 = vpack.c.b16 %v363, %v362
        %v384 = vpack.c.b16 %v365, %v364
        %v385 = vpack.c.b16 %v367, %v366
        %v386 = vpack.c.b16 %v369, %v368
        %v387 = vpack.c.b16 %v371, %v370
        %v388 = vpack.c.b16 %v373, %v372
        %v389 = vpack.c.b16 %v375, %v374
        %v390 = vpack.c.b16 %v377, %v376
        %v391 = vpack.c.b16 %v379, %v378
        %v405 = vsel %vm296, %v293, 0
        %407 = vmatprep.subr.bf16.mxu0 0
        %408 = vmatpush1.bf16.msra.mxu0 %v380
        %409 = vmatprep.subr.bf16.mxu0 0
        %410 = vmatpush1.bf16.msra.mxu0 %v381
        %411 = vmatprep.subr.bf16.mxu0 0
        %412 = vmatpush1.bf16.msra.mxu0 %v382
        %413 = vmatprep.subr.bf16.mxu0 0
        %414 = vmatpush1.bf16.msra.mxu0 %v383
        %415 = vmatprep.subr.bf16.mxu0 0
        %416 = vmatpush1.bf16.msra.mxu0 %v384
        %417 = vmatprep.subr.bf16.mxu0 0
        %418 = vmatpush1.bf16.msra.mxu0 %v385
        %419 = vmatprep.subr.bf16.mxu0 0
        %420 = vmatpush1.bf16.msra.mxu0 %v386
        %421 = vmatprep.subr.bf16.mxu0 0
        %422 = vmatpush1.bf16.msra.mxu0 %v387
        %423 = vmatprep.subr.bf16.mxu0 0
        %424 = vmatpush1.bf16.msra.mxu0 %v388
        %425 = vmatprep.subr.bf16.mxu0 0
        %426 = vmatpush1.bf16.msra.mxu0 %v389
        %427 = vmatprep.subr.bf16.mxu0 0
        %428 = vmatpush1.bf16.msra.mxu0 %v390
        %429 = vmatprep.subr.bf16.mxu0 0
        %430 = vmatpush1.bf16.msra.mxu0 %v391
        %431 = vmatprep.subr.bf16.mxu0 0
        %432 = vmatpush1.bf16.msra.mxu0 0
        %433 = vmatprep.subr.bf16.mxu0 0
        %434 = vmatpush1.bf16.msra.mxu0 0
        %435 = vmatprep.subr.bf16.mxu0 0
        %436 = vmatpush1.bf16.msra.mxu0 0
        %437 = vmatprep.subr.bf16.mxu0 0
        %438 = vmatpush1.bf16.msra.mxu0 0
        %439 = vmatprep.mubr.bf16.mxu0 %v405
        %440 = vmatmul.mubr.bf16.gmra.mrb[0].mxu0 %v299
        %v441 = vpop.f32.mrb[0].mxu0
        %v442 = vadd.f32 %v330, %v441
        %v443 = vpop.f32.mrb[0].mxu0
        %v444 = vpop.f32.mrb[0].mxu0
        %v445 = vadd.f32 %v330, %v444
        %v446 = vpop.f32.mrb[0].mxu0
        %447 = vdwg.mxu0
        %v448 = vmax.f32 %v442, 0.0
        %v449 = vmax.f32 %v445, 0.0
        %v450 = vpack.c.bf16 %v449, %v448
        %v452 = vunpack.c.l.b16 %v450
        %v453 = vunpack.c.h.b16 %v450
        %v454 = vpack.c.b16 %v452, %v452
        %v455 = vpack.c.b16 %v453, %v453
        %458 = vst [vmem:[%s203] sm:$0xf] %v454
        %459 = vst [vmem:[%s203 + $0x4] sm:$0xf] %v455
        %s460 = sand.u32 %s97, 1
        %s461 = scalar_lea.sflag [#allocation4], %s460
        %s462 = sand.u32 %s97, 1
        %s463 = smul.addr %s462, 8
        %s464 = scalar_lea.vmem [#allocation7], %s463
        // Predicated region
        $region41: #{tpu_custom_call.1} parent=31 // pred_check
          %p465 = pneg %p107
        $region42: #{tpu_custom_call.1} parent=31 // pred_check_branch
          %467 = sbr.rel (%p465) target = $region44
        $region43: #{tpu_custom_call.1} parent=31 // pred_region
          %s469 = ssub.s32 128, 128
          %470 = vsyncadd %s461, %s469
          %s471 = smul.addr %s21, 2
          %s472 = smul.addr %s471, 64
          %s473 = scalar_lea.hbm %s3, %s472
          %s474 = sshll.u32 %s464, 4
          %s475 = int_to_ptr.vmem [resolvable:$true] %s474
          %480 = dma.vmem_to_hbm [thread:$0]  %s475, 128, %s473, %s461, 64, 64, 4
        $region44: #{tpu_custom_call.1} parent=31 // pred_fallthru
          _
      $region32: #{tpu_custom_call.1} parent=5 // pred_fallthru
        _
      %p481 = scmp.le.s32.totalorder 2, %s16
      // Predicated region
      $region45: #{tpu_custom_call.1} parent=5 // pred_check
        %p482 = pneg %p481
      $region46: #{tpu_custom_call.1} parent=5 // pred_check_branch
        %484 = sbr.rel (%p482) target = $region48
      $region47: #{tpu_custom_call.1} parent=5 // pred_region
        %s485 = ssub.s32 %s16, 2
        // Predicated region
        $region49: #{tpu_custom_call.1} parent=47 // pred_check
          %p486 = pneg %p113
        $region50: #{tpu_custom_call.1} parent=47 // pred_check_branch
          %488 = sbr.rel (%p486) target = $region52
        $region51: #{tpu_custom_call.1} parent=47 // pred_region
          %s489 = sand.u32 %s98, 1
          %s490 = scalar_lea.sflag [#allocation4], %s489
          %s491 = sand.u32 %s98, 1
          %s492 = smul.addr %s491, 8
          %s493 = scalar_lea.vmem [#allocation7], %s492
          %494 = dma.done %s490, 128
        $region52: #{tpu_custom_call.1} parent=47 // pred_fallthru
          _
      $region48: #{tpu_custom_call.1} parent=5 // pred_fallthru
        _
    $region6: #{tpu_custom_call.1} parent=1 // loop_footer
      %s20 = sadd.s32 1, %s16
    $region7: #{tpu_custom_call.1} parent=1 // loop_footer_branch
      %15 = sbr.rel target = $region3
    $region8: #{tpu_custom_call.1} parent=1 // loop_exit
      _
    %495 = vsyncpa [#allocation3], 1
    %s496 = scalar_lea.sflag [#allocation3], 1
    %497 = vsyncpa %s496, 1
    %498 = vsyncpa [#allocation6], 1
    %499 = vsyncpa [#allocation4], 1
    %s500 = scalar_lea.sflag [#allocation4], 1
    %501 = vsyncpa %s500, 1

</llo_original>
